<compile_context>
chip_gen: v7x
topology: tpu7x:2x2x1
jax: 0.10.0
libtpu: 0.0.40
codegen_flags: <defaults>
</compile_context>

<pallas_src>
import functools

import jax
import jax.numpy as jnp
from jax.experimental import pallas as pl
from jax.experimental.pallas import tpu as pltpu


# --------------------------------------------------------------------------
# Kernels
# --------------------------------------------------------------------------
def _ce_kernel(num_classes, pred_ref, label_ref, loss_ref):
    """Per-row softmax cross entropy, no per-sample weight.

    pred_ref  : (TN, Cp) logits tile (native dtype, cast to f32 in-kernel)
    label_ref : (TN, 1)  int32 class indices (-1 / -100 / OOB => ignored)
    loss_ref  : (TN, 1)  f32 per-row loss (0 for ignored rows)
    """
    x = pred_ref[...].astype(jnp.float32)                       # (TN, Cp)
    m = jnp.max(x, axis=-1, keepdims=True)                      # (TN, 1)
    lse = m + jnp.log(jnp.sum(jnp.exp(x - m), axis=-1, keepdims=True))

    lbl = label_ref[...]                                        # (TN, 1) int32
    col = jax.lax.broadcasted_iota(jnp.int32, x.shape, 1)       # (TN, Cp)
    picked = jnp.sum(jnp.where(col == lbl, x, 0.0), axis=-1, keepdims=True)

    valid = jnp.logical_and(lbl >= 0, lbl < num_classes)        # ignore_index etc.
    # TODO(synk): loss is stored as a (TN, 1) column (masked vst); a lane-dense
    # (1, TN) layout would save store slots but needs an in-kernel sublane->lane
    # relayout. With C padded to >=128 lanes the pred read dominates anyway.
    loss_ref[...] = jnp.where(valid, lse - picked, 0.0)


def _ce_kernel_weighted(num_classes, pred_ref, label_ref, w_ref, loss_ref):
    """Same as _ce_kernel, multiplied by a per-sample weight."""
    x = pred_ref[...].astype(jnp.float32)
    m = jnp.max(x, axis=-1, keepdims=True)
    lse = m + jnp.log(jnp.sum(jnp.exp(x - m), axis=-1, keepdims=True))

    lbl = label_ref[...]
    col = jax.lax.broadcasted_iota(jnp.int32, x.shape, 1)
    picked = jnp.sum(jnp.where(col == lbl, x, 0.0), axis=-1, keepdims=True)

    valid = jnp.logical_and(lbl >= 0, lbl < num_classes)
    loss_ref[...] = jnp.where(valid, lse - picked, 0.0) * w_ref[...]


# --------------------------------------------------------------------------
# Tile sizing (generation-aware)
# --------------------------------------------------------------------------
def _vmem_capacity_bytes():
    try:
        cap = getattr(pltpu.get_tpu_info(), "vmem_capacity_bytes", None)
        if cap:
            return int(cap)
    except Exception:
        pass
    return 64 * 1024 * 1024  # conservative fallback (v7x per-TC VMEM)


def _pick_tile_n(n_rows, c_pad):
    """Pick tile_n so the pred block is a few MiB, scaled to this chip's VMEM."""
    vmem_cap = _vmem_capacity_bytes()
    # ~96 MiB scoped on v5e/v6e (128 MiB physical), ~48 MiB on v7x (64 MiB).
    vmem_limit = min(int(vmem_cap * 3 // 4), 100 * 1024 * 1024)
    # Budget one pred block at ~1/16 of the scoped limit; accounts for the
    # double-buffered input DMA plus f32 in-kernel intermediates (4 B/elem).
    block_budget = vmem_limit // 16
    tile_n = block_budget // (4 * c_pad)
    tile_n = max(8, min(2048, (tile_n // 8) * 8))
    # Don't pad tiny batches up to a giant tile.
    tile_n = min(tile_n, ((n_rows + 7) // 8) * 8)
    return tile_n, vmem_limit


# --------------------------------------------------------------------------
# Wrapper
# --------------------------------------------------------------------------
def _ce_pallas(pred, label, weight=None):
    """Returns (per_row_loss [N] f32, total_sum scalar f32). per_row already
    includes the per-sample weight (if given); ignored rows contribute 0."""
    N, C = pred.shape
    if not jnp.issubdtype(pred.dtype, jnp.floating):
        pred = pred.astype(jnp.float32)

    # Pad classes to a multiple of 128 lanes with a huge negative logit
    # (exp -> 0, never the argmax, never equals a valid label index).
    C_pad = max(128, ((C + 127) // 128) * 128)
    if C_pad != C:
        neg = float(jnp.finfo(pred.dtype).min)
        pred = jnp.pad(pred, ((0, 0), (0, C_pad - C)), constant_values=neg)

    tile_n, vmem_limit = _pick_tile_n(N, C_pad)
    N_pad = ((N + tile_n - 1) // tile_n) * tile_n

    label2d = label.astype(jnp.int32).reshape(N, 1)
    if N_pad != N:
        pred = jnp.pad(pred, ((0, N_pad - N), (0, 0)))
        label2d = jnp.pad(label2d, ((0, N_pad - N), (0, 0)), constant_values=-1)

    inputs = [pred, label2d]
    in_specs = [
        pl.BlockSpec((tile_n, C_pad), lambda i: (i, 0)),
        pl.BlockSpec((tile_n, 1), lambda i: (i, 0)),
    ]
    side_bytes = 8  # label + loss per row
    if weight is not None:
        w2d = weight.astype(jnp.float32).reshape(N, 1)
        if N_pad != N:
            w2d = jnp.pad(w2d, ((0, N_pad - N), (0, 0)), constant_values=0.0)
        inputs.append(w2d)
        in_specs.append(pl.BlockSpec((tile_n, 1), lambda i: (i, 0)))
        kernel = functools.partial(_ce_kernel_weighted, C)
        side_bytes += 4
    else:
        kernel = functools.partial(_ce_kernel, C)

    cost = pl.CostEstimate(
        flops=5 * N_pad * C_pad,
        transcendentals=N_pad * C_pad + N_pad,
        bytes_accessed=N_pad * C_pad * pred.dtype.itemsize + N_pad * side_bytes,
    )

    per_row_full = pl.pallas_call(
        kernel,
        out_shape=jax.ShapeDtypeStruct((N_pad, 1), jnp.float32),
        grid_spec=pltpu.PrefetchScalarGridSpec(
            num_scalar_prefetch=0,
            grid=(N_pad // tile_n,),
            in_specs=in_specs,
            out_specs=pl.BlockSpec((tile_n, 1), lambda i: (i, 0)),
        ),
        compiler_params=pltpu.CompilerParams(
            dimension_semantics=("parallel",),
            vmem_limit_bytes=vmem_limit,
        ),
        cost_estimate=cost,
    )(*inputs)

    per_row = per_row_full[:N, 0]
    total = jnp.sum(per_row_full)          # padded / ignored rows contribute 0
    return per_row, total


# --------------------------------------------------------------------------
# Module
# --------------------------------------------------------------------------
class CustomCrossEntropyLoss:
    """JAX/Pallas port of vega CustomCrossEntropyLoss (softmax CE path)."""

    def __init__(self, desc):
        self.use_sigmoid = desc.get('use_sigmoid', False)
        self.use_mask = desc.get('use_mask', False)
        self.reduction = desc.get('reduction', 'mean')
        self.loss_weight = desc.get('loss_weight', 1.0)
        # TODO(synk): use_sigmoid (binary_cross_entropy) and use_mask
        # (mask_cross_entropy) branches are not implemented in Pallas here.
        if self.use_sigmoid or self.use_mask:
            raise NotImplementedError("only the plain cross_entropy path is implemented")

    def forward(self, cls_score, label, weight=None, avg_factor=None,
                reduction_override=None):
        if reduction_override not in (None, 'none', 'mean', 'sum'):
            raise ValueError('Failed to calculate CustomCrossEntropyLoss.')
        reduction = reduction_override if reduction_override else self.reduction

        per_row, total = _ce_pallas(cls_score, label, weight)

        if reduction == 'none':
            out = per_row
        elif reduction == 'sum':
            out = total
        else:  # 'mean'
            if avg_factor is None:
                out = total / cls_score.shape[0]
            else:
                out = total / avg_factor
        return self.loss_weight * out

    __call__ = forward


# --------------------------------------------------------------------------
# Self-test
# --------------------------------------------------------------------------
if __name__ == "__main__":
    key = jax.random.PRNGKey(0)
    k1, k2, k3 = jax.random.split(key, 3)

    loss_fn = CustomCrossEntropyLoss({'reduction': 'mean', 'loss_weight': 1.0})

    # --- case 1: small aligned-ish batch, f32, with/without weight ---------
    N, C = 16, 16
    cls_score = jax.random.normal(k1, (N, C), dtype=jnp.float32)
    label = jax.random.randint(k2, (N,), 0, C, dtype=jnp.int32)
    weight = jax.random.uniform(k3, (N,), dtype=jnp.float32)

    logp = jax.nn.log_softmax(cls_score, axis=-1)
    ref = -jnp.take_along_axis(logp, label[:, None], axis=-1)[:, 0]

    loss_mean = jax.block_until_ready(loss_fn(cls_score, label))
    assert jnp.allclose(loss_mean, jnp.mean(ref), atol=1e-5, rtol=1e-5), (loss_mean, jnp.mean(ref))

    loss_none = jax.block_until_ready(loss_fn(cls_score, label, reduction_override='none'))
    assert jnp.allclose(loss_none, ref, atol=1e-5, rtol=1e-5)

    loss_sum = jax.block_until_ready(loss_fn(cls_score, label, reduction_override='sum'))
    assert jnp.allclose(loss_sum, jnp.sum(ref), atol=1e-4, rtol=1e-5)

    loss_w = jax.block_until_ready(loss_fn(cls_score, label, weight=weight))
    assert jnp.allclose(loss_w, jnp.mean(ref * weight), atol=1e-5, rtol=1e-5)

    loss_af = jax.block_until_ready(loss_fn(cls_score, label, weight=weight, avg_factor=7.0))
    assert jnp.allclose(loss_af, jnp.sum(ref * weight) / 7.0, atol=1e-5, rtol=1e-5)

    # --- case 2: ragged N, non-128 C, bf16 logits, ignore_index -------------
    N2, C2 = 13, 21
    s2 = jax.random.normal(k1, (N2, C2), dtype=jnp.bfloat16)
    l2 = jax.random.randint(k2, (N2,), 0, C2, dtype=jnp.int32)
    l2 = l2.at[3].set(-100)  # PyTorch default ignore_index

    logp2 = jax.nn.log_softmax(s2.astype(jnp.float32), axis=-1)
    lbl_safe = jnp.clip(l2, 0, C2 - 1)
    ref2 = -jnp.take_along_axis(logp2, lbl_safe[:, None], axis=-1)[:, 0]
    ref2 = jnp.where(l2 >= 0, ref2, 0.0)

    out2_none = jax.block_until_ready(loss_fn(s2, l2, reduction_override='none'))
    assert jnp.allclose(out2_none, ref2, atol=1e-3, rtol=1e-3)

    out2_mean = jax.block_until_ready(loss_fn(s2, l2))
    assert jnp.allclose(out2_mean, jnp.mean(ref2), atol=1e-3, rtol=1e-3)

    print("KERNEL_OK")
</pallas_src>

<mosaic_0001>
module attributes {stable_mosaic.version = 11 : i64} {
  func.func @_ce_kernel(%arg0: i32, %arg1: memref<16x128xf32, #tpu.memory_space<vmem>>, %arg2: memref<16x1xi32, #tpu.memory_space<vmem>>, %arg3: memref<16x1xf32, #tpu.memory_space<vmem>>) attributes {dimension_semantics = [#tpu.dimension_semantics<parallel>], iteration_bounds = array<i64: 1>, scalar_prefetch = 0 : i64, scratch_operands = 0 : i64, tpu.core_type = #tpu.core_type<tc>, window_params = [{transform_indices = @transform_0, window_bounds = array<i64: 16, 128>}, {transform_indices = @transform_1, window_bounds = array<i64: 16, 1>}, {transform_indices = @transform_2, window_bounds = array<i64: 16, 1>}]} {
    %c0 = arith.constant 0 : index
    %c0_0 = arith.constant 0 : index
    %0 = vector.load %arg1[%c0, %c0_0] : memref<16x128xf32, #tpu.memory_space<vmem>>, vector<16x128xf32>
    %cst = arith.constant dense<0xFF800000> : vector<16xf32>
    %1 = vector.multi_reduction <maximumf>, %0, %cst [1] : vector<16x128xf32> to vector<16xf32>
    %2 = vector.shape_cast %1 : vector<16xf32> to vector<16x1xf32>
    %3 = vector.broadcast %2 : vector<16x1xf32> to vector<16x128xf32>
    %4 = arith.subf %0, %3 : vector<16x128xf32>
    %5 = math.exp %4 : vector<16x128xf32>
    %cst_1 = arith.constant dense<0.000000e+00> : vector<16xf32>
    %6 = vector.multi_reduction <add>, %5, %cst_1 [1] : vector<16x128xf32> to vector<16xf32>
    %7 = vector.shape_cast %6 : vector<16xf32> to vector<16x1xf32>
    %8 = math.log %7 : vector<16x1xf32>
    %9 = arith.addf %2, %8 : vector<16x1xf32>
    %c0_2 = arith.constant 0 : index
    %c0_3 = arith.constant 0 : index
    %10 = vector.load %arg2[%c0_2, %c0_3] : memref<16x1xi32, #tpu.memory_space<vmem>>, vector<16x1xi32>
    %11 = tpu.iota {dimensions = array<i32: 1>} : vector<16x128xi32>
    %12 = vector.broadcast %10 : vector<16x1xi32> to vector<16x128xi32>
    %13 = arith.cmpi eq, %11, %12 : vector<16x128xi32>
    %cst_4 = arith.constant 0.000000e+00 : f32
    %14 = vector.broadcast %cst_4 : f32 to vector<16x128xf32>
    %15 = arith.select %13, %0, %14 : vector<16x128xi1>, vector<16x128xf32>
    %cst_5 = arith.constant dense<0.000000e+00> : vector<16xf32>
    %16 = vector.multi_reduction <add>, %15, %cst_5 [1] : vector<16x128xf32> to vector<16xf32>
    %17 = vector.shape_cast %16 : vector<16xf32> to vector<16x1xf32>
    %c0_i32 = arith.constant 0 : i32
    %18 = vector.broadcast %c0_i32 : i32 to vector<16x1xi32>
    %19 = arith.cmpi sge, %10, %18 : vector<16x1xi32>
    %c16_i32 = arith.constant 16 : i32
    %20 = vector.broadcast %c16_i32 : i32 to vector<16x1xi32>
    %21 = arith.cmpi slt, %10, %20 : vector<16x1xi32>
    %22 = arith.andi %19, %21 : vector<16x1xi1>
    %23 = arith.subf %9, %17 : vector<16x1xf32>
    %cst_6 = arith.constant 0.000000e+00 : f32
    %24 = vector.broadcast %cst_6 : f32 to vector<16x1xf32>
    %25 = arith.select %22, %23, %24 : vector<16x1xi1>, vector<16x1xf32>
    %c0_7 = arith.constant 0 : index
    %c0_8 = arith.constant 0 : index
    %26 = vector.load %arg3[%c0_7, %c0_8] : memref<16x1xf32, #tpu.memory_space<vmem>>, vector<16x1xf32>
    tpu.vector_store %arg3[%c0_7, %c0_8], %25 {strides = array<i32>} : memref<16x1xf32, #tpu.memory_space<vmem>>, vector<16x1xf32>,
    return
  }
  func.func @transform_0(%arg0: i32) -> (i32, i32) {
    %c0_i32 = arith.constant 0 : i32
    %c0_i32_0 = arith.constant 0 : i32
    return %arg0, %c0_i32 : i32, i32
  }
  func.func @transform_1(%arg0: i32) -> (i32, i32) {
    %c0_i32 = arith.constant 0 : i32
    %c0_i32_0 = arith.constant 0 : i32
    return %arg0, %c0_i32 : i32, i32
  }
  func.func @transform_2(%arg0: i32) -> (i32, i32) {
    %c0_i32 = arith.constant 0 : i32
    %c0_i32_0 = arith.constant 0 : i32
    return %arg0, %c0_i32 : i32, i32
  }
}

</mosaic_0001>

<llo_original>
// kernel: tpu_custom_call.1
$region0: #{tpu_custom_call.1}
  #allocation0 [shape = 'u32[]', space=smem, size = 0x4, offset = 0x4, fixed_abs, tag = 'smem constant byte address 0x4 - core index']
  #allocation1 [shape = 'u32[144,128]{1,0:T(1,128)}', space=vmem, size = 0x12000, scoped, tag = 'internal scratch']
  %s0 = inlined_call_operand.vmem [shape: f32[16,128], index: 0, kind: input, shape index: {}]
  %s1 = inlined_call_operand.vmem [shape: s32[16,1], index: 1, kind: input, shape index: {}]
  %s2 = inlined_call_operand.vmem [shape: f32[16,1], index: 2, kind: output, shape index: {}]
  %s3 = sld [smem:[#allocation0]]
  $region18: #{tpu_custom_call.1} parent=0
    _
  %s5 = ssub.s32 1, %s3
  %s6 = scalar_select 0, %s5, %s3
  // Predicated region
  $region2: #{tpu_custom_call.1} parent=0 // pred_check
    _
  $region3: #{tpu_custom_call.1} parent=0 // pred_check_branch
    %8 = sbr.rel (0) target = $region5
  $region4: #{tpu_custom_call.1} parent=0 // pred_region
    _
  $region5: #{tpu_custom_call.1} parent=0 // pred_fallthru
    _
  // Predicated region
  $region6: #{tpu_custom_call.1} parent=0 // pred_check
    _
  $region7: #{tpu_custom_call.1} parent=0 // pred_check_branch
    %10 = sbr.rel (0) target = $region9
  $region8: #{tpu_custom_call.1} parent=0 // pred_region
    _
  $region9: #{tpu_custom_call.1} parent=0 // pred_fallthru
    _
  %v11 = vld [vmem:[%s0] sm:$0xff]
  %v12 = vld [vmem:[%s0 + $0x8] sm:$0xff]
  %13 = vmax.xlane.f32.xlu0 %v11
  %v14 = vpop.xlane.xlu0 %13
  %15 = vmax.xlane.f32.xlu0 %v12
  %v16 = vpop.xlane.xlu0 %15
  %v17 = vsub.f32 %v11, %v14
  %v18 = vsub.f32 %v12, %v16
  %v19 = vmul.f32 %v17, 1.442695
  %v20 = vpow.pop %v19
  %v21 = vmul.f32 %v18, 1.442695
  %v22 = vpow.pop %v21
  %23 = vadd.xlane.f32.xlu0 %v20
  %v24 = vpop.xlane.xlu0 %23
  %25 = vadd.xlane.f32.xlu0 %v22
  %v26 = vpop.xlane.xlu0 %25
  %v27 = vlog2.pop %v24
  %v28 = vmul.f32 %v27, 0.6931472
  %v29 = vlog2.pop %v26
  %v30 = vmul.f32 %v29, 0.6931472
  %v31 = vadd.f32 %v14, %v28
  %v32 = vadd.f32 %v16, %v30
  %v33 = vld [vmem:[%s1] sm:$0xff]
  %v34 = vld [vmem:[%s1 + $0x8] sm:$0xff]
  %v35 = vlaneseq
  %v36 = vand.u32 %v35, 127
  %37 = vset.pattern.permute.xlu0 0
  %38 = vperm.xlu0 %37, %v33
  %v39 = vpop.permute.xlu0 %38
  %40 = vset.pattern.permute.xlu0 0
  %41 = vperm.xlu0 %40, %v34
  %v42 = vpop.permute.xlu0 %41
  %vm43 = vcmp.eq.s32.totalorder %v36, %v39
  %vm44 = vcmp.eq.s32.totalorder %v36, %v42
  %v45 = vsel %vm43, %v11, 0.0
  %v46 = vsel %vm44, %v12, 0.0
  %47 = vadd.xlane.f32.xlu0 %v45
  %v48 = vpop.xlane.xlu0 %47
  %49 = vadd.xlane.f32.xlu0 %v46
  %v50 = vpop.xlane.xlu0 %49
  %vm51 = vcmp.ge.s32.totalorder %v33, 0
  %vm52 = vcmp.ge.s32.totalorder %v34, 0
  %vm53 = vcmp.lt.s32.totalorder %v33, 16
  %vm54 = vcmp.lt.s32.totalorder %v34, 16
  %vm55 = vmand %vm51, %vm53
  %vm56 = vmand %vm52, %vm54
  %v57 = vsub.f32 %v31, %v48
  %v58 = vsub.f32 %v32, %v50
  %v59 = vsel %vm55, %v57, 0.0
  %v60 = vsel %vm56, %v58, 0.0
  %vm61 = vcmask 7168
  %62 = vst.msk [vmem:[%s2] sm:$0xff] %vm61, %v59
  %63 = vst.msk [vmem:[%s2 + $0x8] sm:$0xff] %vm61, %v60
  // Predicated region
  $region10: #{tpu_custom_call.1} parent=0 // pred_check
    _
  $region11: #{tpu_custom_call.1} parent=0 // pred_check_branch
    %65 = sbr.rel (0) target = $region13
  $region12: #{tpu_custom_call.1} parent=0 // pred_region
    _
  $region13: #{tpu_custom_call.1} parent=0 // pred_fallthru
    _
  // Predicated region
  $region14: #{tpu_custom_call.1} parent=0 // pred_check
    _
  $region15: #{tpu_custom_call.1} parent=0 // pred_check_branch
    %67 = sbr.rel (0) target = $region17
  $region16: #{tpu_custom_call.1} parent=0 // pred_region
    _
  $region17: #{tpu_custom_call.1} parent=0 // pred_fallthru
    _

</llo_original>
